<compile_context>
chip_gen: v7x
topology: tpu7x:2x2x1
jax: 0.10.0
libtpu: 0.0.40
codegen_flags: <defaults>
</compile_context>

<pallas_src>
import jax
import jax.numpy as jnp
from jax.experimental import pallas as pl
from jax.experimental.pallas import tpu as pltpu


IN_DIM = 784
H1_DIM = 128
H2_DIM = 64
OUT_DIM = 10
LANE = 128      # padded lane-dense width for hidden2 / output
MAX_TM = 2048   # batch-tile cap (f32 x double-buffer ~12.3 MiB at TM=2048)


def mlp_kernel(x_ref, w1_ref, b1_ref, w2_ref, b2_ref, w3_ref, b3_ref, o_ref):
    # x arrives as f32 from HBM; cast to bf16 in-kernel (hidden under DMA).
    x = x_ref[...].astype(jnp.bfloat16)
    # fc1 + relu  (bf16 MXU, f32 accumulate, f32 elementwise)
    h1 = jnp.dot(x, w1_ref[...], preferred_element_type=jnp.float32)
    h1 = jnp.maximum(h1 + b1_ref[...], 0.0)
    # fc2 + relu  (padded to 128 lanes; padded cols are exactly zero)
    h2 = jnp.dot(h1.astype(jnp.bfloat16), w2_ref[...],
                 preferred_element_type=jnp.float32)
    h2 = jnp.maximum(h2 + b2_ref[...], 0.0)
    # fc3 (no activation; padded output cols are exactly zero)
    out = jnp.dot(h2.astype(jnp.bfloat16), w3_ref[...],
                  preferred_element_type=jnp.float32)
    o_ref[...] = (out + b3_ref[...]).astype(o_ref.dtype)  # bf16 writeback


def _round_up(n, m):
    return ((n + m - 1) // m) * m


def prepare_params(w1, b1, w2, b2, w3, b3):
    """One-time layout plumbing: pad to 128 lanes + cast weights to bf16.

    w1 [784,128], w2 [128,64], w3 [64,10]; biases 1-D. Zero padding is inert.
    """
    w1_bf = w1.astype(jnp.bfloat16)                                           # (784,128)
    w2_bf = jnp.pad(w2, ((0, 0), (0, LANE - H2_DIM))).astype(jnp.bfloat16)    # (128,128)
    w3_bf = jnp.pad(w3, ((0, LANE - H2_DIM), (0, LANE - OUT_DIM))
                    ).astype(jnp.bfloat16)                                    # (128,128)
    b1r = b1.reshape(1, H1_DIM).astype(jnp.float32)                           # (1,128)
    b2r = jnp.pad(b2.reshape(1, H2_DIM), ((0, 0), (0, LANE - H2_DIM))
                  ).astype(jnp.float32)                                       # (1,128)
    b3r = jnp.pad(b3.reshape(1, OUT_DIM), ((0, 0), (0, LANE - OUT_DIM))
                  ).astype(jnp.float32)                                       # (1,128)
    return (w1_bf, b1r, w2_bf, b2r, w3_bf, b3r)


def _feedforward_nn(x, params):
    """x: any shape whose trailing dims flatten to 784 (e.g. [B,1,28,28]).

    params: output of prepare_params. Returns [B,10] f32 logits.
    """
    w1_bf, b1r, w2_bf, b2r, w3_bf, b3r = params
    x2d = x.reshape(-1, IN_DIM)          # same semantics as torch x.view(-1, 784)
    B = x2d.shape[0]

    # Batch tile: multiple of 16 (bf16 sublane packing), capped at MAX_TM, and
    # ~B/2 so the grid has >=2 balanced steps for v7x's 2 TensorCores.
    TM = min(MAX_TM, max(16, _round_up(pl.cdiv(B, 2), 16)))
    num_tiles = pl.cdiv(B, TM)           # ragged last block handled by Pallas

    resident = lambda shp: pl.BlockSpec(shp, lambda i: (0,) * len(shp))

    cost = pl.CostEstimate(
        flops=2 * B * (IN_DIM * H1_DIM + H1_DIM * LANE + LANE * LANE),
        transcendentals=0,
        bytes_accessed=(B * IN_DIM * 4 + B * LANE * 2
                        + (IN_DIM * H1_DIM + H1_DIM * LANE + LANE * LANE) * 2
                        + 3 * LANE * 4),
    )

    out_full = pl.pallas_call(
        mlp_kernel,
        out_shape=jax.ShapeDtypeStruct((B, LANE), jnp.bfloat16),
        grid=(num_tiles,),
        in_specs=[
            pl.BlockSpec((TM, IN_DIM), lambda i: (i, 0)),   # x tile (pipelined, f32)
            resident((IN_DIM, H1_DIM)),                     # w1 (VMEM-resident)
            resident((1, H1_DIM)),                          # b1
            resident((H1_DIM, LANE)),                       # w2 (padded)
            resident((1, LANE)),                            # b2 (padded)
            resident((LANE, LANE)),                         # w3 (padded)
            resident((1, LANE)),                            # b3 (padded)
        ],
        out_specs=pl.BlockSpec((TM, LANE), lambda i: (i, 0)),
        compiler_params=pltpu.CompilerParams(
            dimension_semantics=("parallel",),
            vmem_limit_bytes=32 * 1024 * 1024,   # covers v5e's 16 MiB default at TM=2048
        ),
        cost_estimate=cost,
    )(x2d, w1_bf, b1r, w2_bf, b2r, w3_bf, b3r)

    # Slice off the lane padding; return f32 logits (matches PyTorch forward).
    return out_full[:, :OUT_DIM].astype(jnp.float32)


feedforward_nn = jax.jit(_feedforward_nn)


def init_params(key):
    """Deterministic synthetic parameters (shapes match the PyTorch module).

    Weights stored as [in_features, out_features]."""
    k1, k2, k3, k4, k5, k6 = jax.random.split(key, 6)
    w1 = jax.random.normal(k1, (IN_DIM, H1_DIM), jnp.float32) * 0.05
    b1 = jax.random.normal(k2, (H1_DIM,), jnp.float32) * 0.01
    w2 = jax.random.normal(k3, (H1_DIM, H2_DIM), jnp.float32) * 0.05
    b2 = jax.random.normal(k4, (H2_DIM,), jnp.float32) * 0.01
    w3 = jax.random.normal(k5, (H2_DIM, OUT_DIM), jnp.float32) * 0.05
    b3 = jax.random.normal(k6, (OUT_DIM,), jnp.float32) * 0.01
    return w1, b1, w2, b2, w3, b3


if __name__ == "__main__":
    key = jax.random.PRNGKey(0)
    kx, kp = jax.random.split(key)

    # MNIST-like batch: [B, C, H, W] = [40, 1, 28, 28] -> flattens to [40, 784].
    # B=40 exercises two grid steps (TM=32) plus a ragged, masked last block.
    B = 40
    x = jax.random.normal(kx, (B, 1, 28, 28), jnp.float32)
    raw_params = init_params(kp)
    params = prepare_params(*raw_params)   # one-time pad + bf16 cast

    out = feedforward_nn(x, params)
    out = jax.block_until_ready(out)

    # Reference check (plain f32 JAX). The kernel uses bf16 MXU inputs with f32
    # accumulation and a bf16 writeback, so allow a bf16-level tolerance.
    w1, b1, w2, b2, w3, b3 = raw_params
    x2d = x.reshape(-1, IN_DIM)
    ref = jnp.maximum(x2d @ w1 + b1, 0.0)
    ref = jnp.maximum(ref @ w2 + b2, 0.0)
    ref = ref @ w3 + b3

    assert out.shape == (B, OUT_DIM), out.shape
    assert jnp.allclose(out, ref, atol=3e-2, rtol=3e-2), "mismatch vs reference"

    print("KERNEL_OK")
</pallas_src>

<mosaic_0001>
module attributes {stable_mosaic.version = 11 : i64} {
  func.func @mlp_kernel(%arg0: i32, %arg1: memref<32x784xf32, #tpu.memory_space<vmem>>, %arg2: memref<784x128xbf16, #tpu.memory_space<vmem>>, %arg3: memref<1x128xf32, #tpu.memory_space<vmem>>, %arg4: memref<128x128xbf16, #tpu.memory_space<vmem>>, %arg5: memref<1x128xf32, #tpu.memory_space<vmem>>, %arg6: memref<128x128xbf16, #tpu.memory_space<vmem>>, %arg7: memref<1x128xf32, #tpu.memory_space<vmem>>, %arg8: memref<32x128xbf16, #tpu.memory_space<vmem>>) attributes {dimension_semantics = [#tpu.dimension_semantics<parallel>], iteration_bounds = array<i64: 2>, scalar_prefetch = 0 : i64, scratch_operands = 0 : i64, tpu.core_type = #tpu.core_type<tc>, window_params = [{transform_indices = @transform_0, window_bounds = array<i64: 32, 784>}, {pipeline_mode = #tpu.pipeline_mode<synchronous>, transform_indices = @transform_1, window_bounds = array<i64: 784, 128>}, {pipeline_mode = #tpu.pipeline_mode<synchronous>, transform_indices = @transform_2, window_bounds = array<i64: 1, 128>}, {pipeline_mode = #tpu.pipeline_mode<synchronous>, transform_indices = @transform_3, window_bounds = array<i64: 128, 128>}, {pipeline_mode = #tpu.pipeline_mode<synchronous>, transform_indices = @transform_4, window_bounds = array<i64: 1, 128>}, {pipeline_mode = #tpu.pipeline_mode<synchronous>, transform_indices = @transform_5, window_bounds = array<i64: 128, 128>}, {pipeline_mode = #tpu.pipeline_mode<synchronous>, transform_indices = @transform_6, window_bounds = array<i64: 1, 128>}, {transform_indices = @transform_7, window_bounds = array<i64: 32, 128>}]} {
    %c0 = arith.constant 0 : index
    %c0_0 = arith.constant 0 : index
    %0 = vector.load %arg1[%c0, %c0_0] : memref<32x784xf32, #tpu.memory_space<vmem>>, vector<32x784xf32>
    %1 = arith.truncf %0 : vector<32x784xf32> to vector<32x784xbf16>
    %c0_1 = arith.constant 0 : index
    %c0_2 = arith.constant 0 : index
    %2 = vector.load %arg2[%c0_1, %c0_2] : memref<784x128xbf16, #tpu.memory_space<vmem>>, vector<784x128xbf16>
    %cst = arith.constant dense<0.000000e+00> : vector<32x128xf32>
    %3 = tpu.matmul %1, %2, %cst {dimension_numbers = #tpu.dot_dimension_numbers<[1], [0], [0], [1], [0, 0, 1, 1], [], []>} : vector<32x784xbf16>, vector<784x128xbf16>, vector<32x128xf32> -> vector<32x128xf32>
    %c0_3 = arith.constant 0 : index
    %c0_4 = arith.constant 0 : index
    %4 = vector.load %arg3[%c0_3, %c0_4] : memref<1x128xf32, #tpu.memory_space<vmem>>, vector<1x128xf32>
    %5 = vector.broadcast %4 : vector<1x128xf32> to vector<32x128xf32>
    %6 = arith.addf %3, %5 : vector<32x128xf32>
    %cst_5 = arith.constant 0.000000e+00 : f32
    %7 = vector.broadcast %cst_5 : f32 to vector<32x128xf32>
    %8 = arith.maximumf %6, %7 : vector<32x128xf32>
    %9 = arith.truncf %8 : vector<32x128xf32> to vector<32x128xbf16>
    %c0_6 = arith.constant 0 : index
    %c0_7 = arith.constant 0 : index
    %10 = vector.load %arg4[%c0_6, %c0_7] : memref<128x128xbf16, #tpu.memory_space<vmem>>, vector<128x128xbf16>
    %cst_8 = arith.constant dense<0.000000e+00> : vector<32x128xf32>
    %11 = tpu.matmul %9, %10, %cst_8 {dimension_numbers = #tpu.dot_dimension_numbers<[1], [0], [0], [1], [0, 0, 1, 1], [], []>} : vector<32x128xbf16>, vector<128x128xbf16>, vector<32x128xf32> -> vector<32x128xf32>
    %c0_9 = arith.constant 0 : index
    %c0_10 = arith.constant 0 : index
    %12 = vector.load %arg5[%c0_9, %c0_10] : memref<1x128xf32, #tpu.memory_space<vmem>>, vector<1x128xf32>
    %13 = vector.broadcast %12 : vector<1x128xf32> to vector<32x128xf32>
    %14 = arith.addf %11, %13 : vector<32x128xf32>
    %cst_11 = arith.constant 0.000000e+00 : f32
    %15 = vector.broadcast %cst_11 : f32 to vector<32x128xf32>
    %16 = arith.maximumf %14, %15 : vector<32x128xf32>
    %17 = arith.truncf %16 : vector<32x128xf32> to vector<32x128xbf16>
    %c0_12 = arith.constant 0 : index
    %c0_13 = arith.constant 0 : index
    %18 = vector.load %arg6[%c0_12, %c0_13] : memref<128x128xbf16, #tpu.memory_space<vmem>>, vector<128x128xbf16>
    %cst_14 = arith.constant dense<0.000000e+00> : vector<32x128xf32>
    %19 = tpu.matmul %17, %18, %cst_14 {dimension_numbers = #tpu.dot_dimension_numbers<[1], [0], [0], [1], [0, 0, 1, 1], [], []>} : vector<32x128xbf16>, vector<128x128xbf16>, vector<32x128xf32> -> vector<32x128xf32>
    %c0_15 = arith.constant 0 : index
    %c0_16 = arith.constant 0 : index
    %20 = vector.load %arg7[%c0_15, %c0_16] : memref<1x128xf32, #tpu.memory_space<vmem>>, vector<1x128xf32>
    %21 = vector.broadcast %20 : vector<1x128xf32> to vector<32x128xf32>
    %22 = arith.addf %19, %21 : vector<32x128xf32>
    %23 = arith.truncf %22 : vector<32x128xf32> to vector<32x128xbf16>
    %c0_17 = arith.constant 0 : index
    %c0_18 = arith.constant 0 : index
    %24 = vector.load %arg8[%c0_17, %c0_18] : memref<32x128xbf16, #tpu.memory_space<vmem>>, vector<32x128xbf16>
    tpu.vector_store %arg8[%c0_17, %c0_18], %23 {strides = array<i32>} : memref<32x128xbf16, #tpu.memory_space<vmem>>, vector<32x128xbf16>,
    return
  }
  func.func @transform_0(%arg0: i32) -> (i32, i32) {
    %c0_i32 = arith.constant 0 : i32
    %c0_i32_0 = arith.constant 0 : i32
    return %arg0, %c0_i32 : i32, i32
  }
  func.func @transform_1(%arg0: i32) -> (i32, i32) {
    %c0_i32 = arith.constant 0 : i32
    %c0_i32_0 = arith.constant 0 : i32
    %c0_i32_1 = arith.constant 0 : i32
    return %c0_i32, %c0_i32_0 : i32, i32
  }
  func.func @transform_2(%arg0: i32) -> (i32, i32) {
    %c0_i32 = arith.constant 0 : i32
    %c0_i32_0 = arith.constant 0 : i32
    %c0_i32_1 = arith.constant 0 : i32
    return %c0_i32, %c0_i32_0 : i32, i32
  }
  func.func @transform_3(%arg0: i32) -> (i32, i32) {
    %c0_i32 = arith.constant 0 : i32
    %c0_i32_0 = arith.constant 0 : i32
    %c0_i32_1 = arith.constant 0 : i32
    return %c0_i32, %c0_i32_0 : i32, i32
  }
  func.func @transform_4(%arg0: i32) -> (i32, i32) {
    %c0_i32 = arith.constant 0 : i32
    %c0_i32_0 = arith.constant 0 : i32
    %c0_i32_1 = arith.constant 0 : i32
    return %c0_i32, %c0_i32_0 : i32, i32
  }
  func.func @transform_5(%arg0: i32) -> (i32, i32) {
    %c0_i32 = arith.constant 0 : i32
    %c0_i32_0 = arith.constant 0 : i32
    %c0_i32_1 = arith.constant 0 : i32
    return %c0_i32, %c0_i32_0 : i32, i32
  }
  func.func @transform_6(%arg0: i32) -> (i32, i32) {
    %c0_i32 = arith.constant 0 : i32
    %c0_i32_0 = arith.constant 0 : i32
    %c0_i32_1 = arith.constant 0 : i32
    return %c0_i32, %c0_i32_0 : i32, i32
  }
  func.func @transform_7(%arg0: i32) -> (i32, i32) {
    %c0_i32 = arith.constant 0 : i32
    %c0_i32_0 = arith.constant 0 : i32
    return %arg0, %c0_i32 : i32, i32
  }
}

</mosaic_0001>

<llo_original>
// kernel: _feedforward_nn.1
$region0: #{_feedforward_nn.1}
  #allocation0 [shape = 'u32[]', space=smem, size = 0x4, offset = 0x4, fixed_abs, tag = 'smem constant byte address 0x4 - core index']
  #allocation1 [shape = 'u32[144,128]{1,0:T(1,128)}', space=vmem, size = 0x12000, scoped, tag = 'internal scratch']
  %s0 = inlined_call_operand.vmem [shape: f32[40,784], index: 0, kind: input, shape index: {}]
  %s1 = inlined_call_operand.vmem [shape: bf16[784,128], index: 1, kind: input, shape index: {}]
  %s2 = inlined_call_operand.vmem [shape: f32[1,128], index: 2, kind: input, shape index: {}]
  %s3 = inlined_call_operand.vmem [shape: bf16[128,128], index: 3, kind: input, shape index: {}]
  %s4 = inlined_call_operand.vmem [shape: f32[1,128], index: 4, kind: input, shape index: {}]
  %s5 = inlined_call_operand.vmem [shape: bf16[128,128], index: 5, kind: input, shape index: {}]
  %s6 = inlined_call_operand.vmem [shape: f32[1,128], index: 6, kind: input, shape index: {}]
  %s7 = inlined_call_operand.vmem [shape: bf16[40,128], index: 7, kind: output, shape index: {}]
  %s8 = sld [smem:[#allocation0]]
  $region105: #{_feedforward_nn.1} parent=0
    _
  %s10 = ssub.s32 1, %s8
  %s11 = scalar_select 0, %s10, %s8
  $region1: #{_feedforward_nn.1} parent=0
    #allocation2 [shape = 'u8[16384]{0}', space=vmem, size = 0x4000, scoped, tag = 'output window, operand 0']
    loop: start=0, step=1, limit=4
    $region2: #{_feedforward_nn.1} parent=1 // loop_pre_header
      _
    $region3: #{_feedforward_nn.1} parent=1 // loop_header
      %s13 = sphi 0, %s17
      %p14 = scmp.ge.s32.totalorder %s13, 4
      %s23 = sphi 0, %s25
      %s26 = sphi 0, %s23
      %s27 = sphi 0, %s26
      %s43 = sphi 0, %s27
      %s47 = sphi 0, %s47
      %s49 = sphi 0, %s47
      %s50 = sphi 0, %s49
      %s64 = sphi 0, %s50
      %s68 = sphi 0, %s68
      %s70 = sphi 0, %s68
      %s71 = sphi 0, %s70
      %s85 = sphi 0, %s71
      %s89 = sphi 0, %s89
      %s91 = sphi 0, %s89
      %s92 = sphi 0, %s91
      %s106 = sphi 0, %s92
      %s110 = sphi 0, %s110
      %s112 = sphi 0, %s110
      %s113 = sphi 0, %s112
      %s127 = sphi 0, %s113
      %s131 = sphi 0, %s131
      %s133 = sphi 0, %s131
      %s134 = sphi 0, %s133
      %s148 = sphi 0, %s134
      %s152 = sphi 0, %s152
      %s154 = sphi 0, %s152
      %s155 = sphi 0, %s154
      %s169 = sphi 0, %s155
      %s175 = sphi 0, %s177
      %s178 = sphi 0, %s175
      %s179 = sphi 0, %s178
      %s195 = sphi 0, %s179
    $region4: #{_feedforward_nn.1} parent=1 // loop_header_branch
      %16 = sbr.rel (%p14) target = $region8
    $region5: #{_feedforward_nn.1} parent=1 // loop_body
      %s18 = ssub.s32 %s13, 1
      %s19 = ssub.s32 %s13, 2
      %s20 = sadd.s32 %s13, 1
      %s21 = ssub.s32 %s13, %s20
      %p22 = scmp.eq.s32.totalorder %s21, 0
      %s24 = sadd.s32 %s23, 1
      %s25 = scalar_select %p22, %s23, %s24
      %p28 = pneg %p22
      %p29 = scmp.eq.s32.totalorder %s13, 1
      %p30 = por %p28, %p29
      %p31 = scmp.ne.s32.totalorder %s23, %s26
      %p32 = scmp.eq.s32.totalorder %s13, 0
      %p33 = por %p31, %p32
      %p34 = scmp.ne.s32.totalorder %s23, %s26
      %p35 = scmp.eq.s32.totalorder %s18, 1
      %p36 = por %p34, %p35
      %p37 = scmp.ne.s32.totalorder %s26, %s27
      %p38 = scmp.eq.s32.totalorder %s18, 0
      %p39 = por %p37, %p38
      %p40 = scmp.ne.s32.totalorder %s26, %s27
      %p41 = scmp.eq.s32.totalorder %s19, 1
      %p42 = por %p40, %p41
      %p44 = scmp.ne.s32.totalorder %s27, %s43
      %p45 = scmp.eq.s32.totalorder %s19, 0
      %p46 = por %p44, %p45
      %s48 = sadd.s32 %s47, 1
      %p51 = scmp.eq.s32.totalorder %s13, 1
      %p52 = scmp.ne.s32.totalorder %s47, %s49
      %p53 = scmp.eq.s32.totalorder %s13, 0
      %p54 = por %p52, %p53
      %p55 = scmp.ne.s32.totalorder %s47, %s49
      %p56 = scmp.eq.s32.totalorder %s18, 1
      %p57 = por %p55, %p56
      %p58 = scmp.ne.s32.totalorder %s49, %s50
      %p59 = scmp.eq.s32.totalorder %s18, 0
      %p60 = por %p58, %p59
      %p61 = scmp.ne.s32.totalorder %s49, %s50
      %p62 = scmp.eq.s32.totalorder %s19, 1
      %p63 = por %p61, %p62
      %p65 = scmp.ne.s32.totalorder %s50, %s64
      %p66 = scmp.eq.s32.totalorder %s19, 0
      %p67 = por %p65, %p66
      %s69 = sadd.s32 %s68, 1
      %p72 = scmp.eq.s32.totalorder %s13, 1
      %p73 = scmp.ne.s32.totalorder %s68, %s70
      %p74 = scmp.eq.s32.totalorder %s13, 0
      %p75 = por %p73, %p74
      %p76 = scmp.ne.s32.totalorder %s68, %s70
      %p77 = scmp.eq.s32.totalorder %s18, 1
      %p78 = por %p76, %p77
      %p79 = scmp.ne.s32.totalorder %s70, %s71
      %p80 = scmp.eq.s32.totalorder %s18, 0
      %p81 = por %p79, %p80
      %p82 = scmp.ne.s32.totalorder %s70, %s71
      %p83 = scmp.eq.s32.totalorder %s19, 1
      %p84 = por %p82, %p83
      %p86 = scmp.ne.s32.totalorder %s71, %s85
      %p87 = scmp.eq.s32.totalorder %s19, 0
      %p88 = por %p86, %p87
      %s90 = sadd.s32 %s89, 1
      %p93 = scmp.eq.s32.totalorder %s13, 1
      %p94 = scmp.ne.s32.totalorder %s89, %s91
      %p95 = scmp.eq.s32.totalorder %s13, 0
      %p96 = por %p94, %p95
      %p97 = scmp.ne.s32.totalorder %s89, %s91
      %p98 = scmp.eq.s32.totalorder %s18, 1
      %p99 = por %p97, %p98
      %p100 = scmp.ne.s32.totalorder %s91, %s92
      %p101 = scmp.eq.s32.totalorder %s18, 0
      %p102 = por %p100, %p101
      %p103 = scmp.ne.s32.totalorder %s91, %s92
      %p104 = scmp.eq.s32.totalorder %s19, 1
      %p105 = por %p103, %p104
      %p107 = scmp.ne.s32.totalorder %s92, %s106
      %p108 = scmp.eq.s32.totalorder %s19, 0
      %p109 = por %p107, %p108
      %s111 = sadd.s32 %s110, 1
      %p114 = scmp.eq.s32.totalorder %s13, 1
      %p115 = scmp.ne.s32.totalorder %s110, %s112
      %p116 = scmp.eq.s32.totalorder %s13, 0
      %p117 = por %p115, %p116
      %p118 = scmp.ne.s32.totalorder %s110, %s112
      %p119 = scmp.eq.s32.totalorder %s18, 1
      %p120 = por %p118, %p119
      %p121 = scmp.ne.s32.totalorder %s112, %s113
      %p122 = scmp.eq.s32.totalorder %s18, 0
      %p123 = por %p121, %p122
      %p124 = scmp.ne.s32.totalorder %s112, %s113
      %p125 = scmp.eq.s32.totalorder %s19, 1
      %p126 = por %p124, %p125
      %p128 = scmp.ne.s32.totalorder %s113, %s127
      %p129 = scmp.eq.s32.totalorder %s19, 0
      %p130 = por %p128, %p129
      %s132 = sadd.s32 %s131, 1
      %p135 = scmp.eq.s32.totalorder %s13, 1
      %p136 = scmp.ne.s32.totalorder %s131, %s133
      %p137 = scmp.eq.s32.totalorder %s13, 0
      %p138 = por %p136, %p137
      %p139 = scmp.ne.s32.totalorder %s131, %s133
      %p140 = scmp.eq.s32.totalorder %s18, 1
      %p141 = por %p139, %p140
      %p142 = scmp.ne.s32.totalorder %s133, %s134
      %p143 = scmp.eq.s32.totalorder %s18, 0
      %p144 = por %p142, %p143
      %p145 = scmp.ne.s32.totalorder %s133, %s134
      %p146 = scmp.eq.s32.totalorder %s19, 1
      %p147 = por %p145, %p146
      %p149 = scmp.ne.s32.totalorder %s134, %s148
      %p150 = scmp.eq.s32.totalorder %s19, 0
      %p151 = por %p149, %p150
      %s153 = sadd.s32 %s152, 1
      %p156 = scmp.eq.s32.totalorder %s13, 1
      %p157 = scmp.ne.s32.totalorder %s152, %s154
      %p158 = scmp.eq.s32.totalorder %s13, 0
      %p159 = por %p157, %p158
      %p160 = scmp.ne.s32.totalorder %s152, %s154
      %p161 = scmp.eq.s32.totalorder %s18, 1
      %p162 = por %p160, %p161
      %p163 = scmp.ne.s32.totalorder %s154, %s155
      %p164 = scmp.eq.s32.totalorder %s18, 0
      %p165 = por %p163, %p164
      %p166 = scmp.ne.s32.totalorder %s154, %s155
      %p167 = scmp.eq.s32.totalorder %s19, 1
      %p168 = por %p166, %p167
      %p170 = scmp.ne.s32.totalorder %s155, %s169
      %p171 = scmp.eq.s32.totalorder %s19, 0
      %p172 = por %p170, %p171
      %s173 = ssub.s32 %s13, %s20
      %p174 = scmp.eq.s32.totalorder %s173, 0
      %s176 = sadd.s32 %s175, 1
      %s177 = scalar_select %p174, %s175, %s176
      %p180 = pneg %p174
      %p181 = scmp.eq.s32.totalorder %s13, 1
      %p182 = por %p180, %p181
      %p183 = scmp.ne.s32.totalorder %s175, %s178
      %p184 = scmp.eq.s32.totalorder %s13, 0
      %p185 = por %p183, %p184
      %p186 = scmp.ne.s32.totalorder %s175, %s178
      %p187 = scmp.eq.s32.totalorder %s18, 1
      %p188 = por %p186, %p187
      %p189 = scmp.ne.s32.totalorder %s178, %s179
      %p190 = scmp.eq.s32.totalorder %s18, 0
      %p191 = por %p189, %p190
      %p192 = scmp.ne.s32.totalorder %s178, %s179
      %p193 = scmp.eq.s32.totalorder %s19, 1
      %p194 = por %p192, %p193
      %p196 = scmp.ne.s32.totalorder %s179, %s195
      %p197 = scmp.eq.s32.totalorder %s19, 0
      %p198 = por %p196, %p197
      %p199 = scmp.le.s32.totalorder 1, %s13
      %p200 = scmp.lt.s32.totalorder %s13, 3
      %p201 = pnand %p199, %p200
      %p202 = pneg %p201
      // Predicated region
      $region9: #{_feedforward_nn.1} parent=5 // pred_check
        _
      $region10: #{_feedforward_nn.1} parent=5 // pred_check_branch
        %204 = sbr.rel (%p201) target = $region12
      $region11: #{_feedforward_nn.1} parent=5 // pred_region
        %s205 = ssub.s32 %s13, 1
        // Predicated region
        $region13: #{_feedforward_nn.1} parent=11 // pred_check
          %p206 = pneg %p60
        $region14: #{_feedforward_nn.1} parent=11 // pred_check_branch
          %208 = sbr.rel (%p206) target = $region16
        $region15: #{_feedforward_nn.1} parent=11 // pred_region
          _
        $region16: #{_feedforward_nn.1} parent=11 // pred_fallthru
          _
        // Predicated region
        $region17: #{_feedforward_nn.1} parent=11 // pred_check
          %p209 = pneg %p81
        $region18: #{_feedforward_nn.1} parent=11 // pred_check_branch
          %211 = sbr.rel (%p209) target = $region20
        $region19: #{_feedforward_nn.1} parent=11 // pred_region
          _
        $region20: #{_feedforward_nn.1} parent=11 // pred_fallthru
          _
        // Predicated region
        $region21: #{_feedforward_nn.1} parent=11 // pred_check
          %p212 = pneg %p102
        $region22: #{_feedforward_nn.1} parent=11 // pred_check_branch
          %214 = sbr.rel (%p212) target = $region24
        $region23: #{_feedforward_nn.1} parent=11 // pred_region
          _
        $region24: #{_feedforward_nn.1} parent=11 // pred_fallthru
          _
        // Predicated region
        $region25: #{_feedforward_nn.1} parent=11 // pred_check
          %p215 = pneg %p123
        $region26: #{_feedforward_nn.1} parent=11 // pred_check_branch
          %217 = sbr.rel (%p215) target = $region28
        $region27: #{_feedforward_nn.1} parent=11 // pred_region
          _
        $region28: #{_feedforward_nn.1} parent=11 // pred_fallthru
          _
        // Predicated region
        $region29: #{_feedforward_nn.1} parent=11 // pred_check
          %p218 = pneg %p144
        $region30: #{_feedforward_nn.1} parent=11 // pred_check_branch
          %220 = sbr.rel (%p218) target = $region32
        $region31: #{_feedforward_nn.1} parent=11 // pred_region
          _
        $region32: #{_feedforward_nn.1} parent=11 // pred_fallthru
          _
        // Predicated region
        $region33: #{_feedforward_nn.1} parent=11 // pred_check
          %p221 = pneg %p165
        $region34: #{_feedforward_nn.1} parent=11 // pred_check_branch
          %223 = sbr.rel (%p221) target = $region36
        $region35: #{_feedforward_nn.1} parent=11 // pred_region
          _
        $region36: #{_feedforward_nn.1} parent=11 // pred_fallthru
          _
      $region12: #{_feedforward_nn.1} parent=5 // pred_fallthru
        _
      %p224 = scmp.lt.s32.totalorder %s13, 2
      // Predicated region
      $region37: #{_feedforward_nn.1} parent=5 // pred_check
        %p225 = pneg %p224
      $region38: #{_feedforward_nn.1} parent=5 // pred_check_branch
        %227 = sbr.rel (%p225) target = $region40
      $region39: #{_feedforward_nn.1} parent=5 // pred_region
        // Predicated region
        $region41: #{_feedforward_nn.1} parent=39 // pred_check
          %p228 = pneg %p33
        $region42: #{_feedforward_nn.1} parent=39 // pred_check_branch
          %230 = sbr.rel (%p228) target = $region44
        $region43: #{_feedforward_nn.1} parent=39 // pred_region
          %s231 = smul.u32 4, %s13
          %s232 = ssub.s32 5, %s231
          %p233 = scmp.lt.s32.totalorder %s232, 4
          %s234 = scalar_select %p233, %s232, 4
          %s235 = smul.u32 128, %s234
          %s236 = smul.u32 %s235, 7
          %p237 = scmp.lt.s32.totalorder %s231, 4
          %s238 = scalar_select %p237, %s231, 4
          %s239 = smul.addr %s238, 7
          %s240 = smul.addr %s239, 8
          %s241 = scalar_lea.vmem %s0, %s240
          %s242 = smul.u32 4, %s13
          %s243 = ssub.s32 5, %s242
          %p244 = scmp.lt.s32.totalorder %s243, 4
          %s245 = scalar_select %p244, %s243, 4
          %s246 = smul.u32 128, %s245
          %s247 = smul.u32 %s246, 7
        $region44: #{_feedforward_nn.1} parent=39 // pred_fallthru
          _
      $region40: #{_feedforward_nn.1} parent=5 // pred_fallthru
        _
      %p248 = scmp.le.s32.totalorder 1, %s13
      %p249 = scmp.lt.s32.totalorder %s13, 3
      %p250 = pnand %p248, %p249
      %p251 = pneg %p250
      // Predicated region
      $region45: #{_feedforward_nn.1} parent=5 // pred_check
        _
      $region46: #{_feedforward_nn.1} parent=5 // pred_check_branch
        %253 = sbr.rel (%p250) target = $region48
      $region47: #{_feedforward_nn.1} parent=5 // pred_region
        %s254 = ssub.s32 %s13, 1
        %s255 = smul.u32 4, %s18
        %s256 = ssub.s32 5, %s255
        %p257 = scmp.lt.s32.totalorder %s256, 4
        %s258 = scalar_select %p257, %s256, 4
        %s259 = smul.u32 128, %s258
        %s260 = smul.u32 %s259, 7
        %p261 = scmp.lt.s32.totalorder %s255, 4
        %s262 = scalar_select %p261, %s255, 4
        %s263 = smul.addr %s262, 7
        %s264 = smul.addr %s263, 8
        %s265 = scalar_lea.vmem %s0, %s264
        %p266 = pneg %p39
        %p267 = pneg %p36
        %p268 = pneg %p60
        %p269 = pneg %p57
        %p270 = pneg %p81
        %p271 = pneg %p78
        %p272 = pneg %p102
        %p273 = pneg %p99
        %p274 = pneg %p123
        %p275 = pneg %p120
        %p276 = pneg %p144
        %p277 = pneg %p141
        %p278 = pneg %p165
        %p279 = pneg %p162
        %p280 = pneg %p191
        %p281 = pneg %p188
        %s282 = sand.u32 %s178, 1
        %s283 = sand.u32 %s178, 1
        %s284 = smul.addr %s283, 16
        %s285 = scalar_lea.vmem [#allocation2], %s284
        %s286 = smul.u32 4, %s18
        %s287 = ssub.s32 5, %s286
        %p288 = scmp.lt.s32.totalorder %s287, 4
        %s289 = scalar_select %p288, %s287, 4
        %s290 = smul.u32 128, %s289
        %s291 = smul.u32 %s290, 7
        %p292 = scmp.lt.s32.totalorder %s286, 4
        %s293 = scalar_select %p292, %s286, 4
        %s294 = smul.addr %s293, 7
        %s295 = smul.addr %s294, 8
        %s296 = scalar_lea.vmem %s0, %s295
        %s297 = smul.u32 4, %s18
        %s298 = ssub.s32 5, %s297
        %p299 = scmp.lt.s32.totalorder %s298, 4
        %s300 = scalar_select %p299, %s298, 4
        %s301 = smul.u32 128, %s300
        %s302 = smul.u32 %s301, 7
        %s303 = smul.u32 4, %s18
        %s304 = ssub.s32 5, %s303
        %p305 = scmp.lt.s32.totalorder %s304, 4
        %s306 = scalar_select %p305, %s304, 4
        %s307 = smul.u32 64, %s306
        %v309 = vld [vmem:[%s296] sm:$0xff]
        %v310 = vld [vmem:[%s296 + $0x8] sm:$0xff]
        %v311 = vld [vmem:[%s296 + $0x10] sm:$0xff]
        %v312 = vld [vmem:[%s296 + $0x18] sm:$0xff]
        %v313 = vld [vmem:[%s296 + $0x20] sm:$0xff]
        %v314 = vld [vmem:[%s296 + $0x28] sm:$0xff]
        %v315 = vld [vmem:[%s296 + $0x30] sm:$0xff]
        %v316 = vld [vmem:[%s296 + $0x38] sm:$0xff]
        %v317 = vld [vmem:[%s296 + $0x40] sm:$0xff]
        %v318 = vld [vmem:[%s296 + $0x48] sm:$0xff]
        %v319 = vld [vmem:[%s296 + $0x50] sm:$0xff]
        %v320 = vld [vmem:[%s296 + $0x58] sm:$0xff]
        %v321 = vld [vmem:[%s296 + $0x60] sm:$0xff]
        %v322 = vld [vmem:[%s296 + $0x68] sm:$0xff]
        %v323 = vld [vmem:[%s296 + $0x70] sm:$0xff]
        %v324 = vld [vmem:[%s296 + $0x78] sm:$0xff]
        %v325 = vld [vmem:[%s296 + $0x80] sm:$0xff]
        %v326 = vld [vmem:[%s296 + $0x88] sm:$0xff]
        %v327 = vld [vmem:[%s296 + $0x90] sm:$0xff]
        %v328 = vld [vmem:[%s296 + $0x98] sm:$0xff]
        %v329 = vld [vmem:[%s296 + $0xa0] sm:$0xff]
        %v330 = vld [vmem:[%s296 + $0xa8] sm:$0xff]
        %v331 = vld [vmem:[%s296 + $0xb0] sm:$0xff]
        %v332 = vld [vmem:[%s296 + $0xb8] sm:$0xff]
        %v333 = vld [vmem:[%s296 + $0xc0] sm:$0xff]
        %v334 = vld [vmem:[%s296 + $0xc8] sm:$0xff]
        %v335 = vld [vmem:[%s296 + $0xd0] sm:$0xff]
        %v336 = vld [vmem:[%s296 + $0xd8] sm:$0xff]
        %v337 = vpack.c.bf16 %v316, %v309
        %v338 = vpack.c.bf16 %v317, %v310
        %v339 = vpack.c.bf16 %v318, %v311
        %v340 = vpack.c.bf16 %v319, %v312
        %v341 = vpack.c.bf16 %v320, %v313
        %v342 = vpack.c.bf16 %v321, %v314
        %v343 = vpack.c.bf16 %v322, %v315
        %v344 = vpack.c.bf16 %v330, %v323
        %v345 = vpack.c.bf16 %v331, %v324
        %v346 = vpack.c.bf16 %v332, %v325
        %v347 = vpack.c.bf16 %v333, %v326
        %v348 = vpack.c.bf16 %v334, %v327
        %v349 = vpack.c.bf16 %v335, %v328
        %v350 = vpack.c.bf16 %v336, %v329
        %v351 = vld [vmem:[%s1] sm:$0xf]
        %v352 = vld [vmem:[%s1 + $0x4] sm:$0xf]
        %v353 = vld [vmem:[%s1 + $0x8] sm:$0xf]
        %v354 = vld [vmem:[%s1 + $0xc] sm:$0xf]
        %v355 = vld [vmem:[%s1 + $0x10] sm:$0xf]
        %v356 = vld [vmem:[%s1 + $0x14] sm:$0xf]
        %v357 = vld [vmem:[%s1 + $0x18] sm:$0xf]
        %v358 = vld [vmem:[%s1 + $0x1c] sm:$0xf]
        %v359 = vld [vmem:[%s1 + $0x20] sm:$0xf]
        %v360 = vld [vmem:[%s1 + $0x24] sm:$0xf]
        %v361 = vld [vmem:[%s1 + $0x28] sm:$0xf]
        %v362 = vld [vmem:[%s1 + $0x2c] sm:$0xf]
        %v363 = vld [vmem:[%s1 + $0x30] sm:$0xf]
        %v364 = vld [vmem:[%s1 + $0x34] sm:$0xf]
        %v365 = vld [vmem:[%s1 + $0x38] sm:$0xf]
        %v366 = vld [vmem:[%s1 + $0x3c] sm:$0xf]
        %v367 = vld [vmem:[%s1 + $0x40] sm:$0xf]
        %v368 = vld [vmem:[%s1 + $0x44] sm:$0xf]
        %v369 = vld [vmem:[%s1 + $0x48] sm:$0xf]
        %v370 = vld [vmem:[%s1 + $0x4c] sm:$0xf]
        %v371 = vld [vmem:[%s1 + $0x50] sm:$0xf]
        %v372 = vld [vmem:[%s1 + $0x54] sm:$0xf]
        %v373 = vld [vmem:[%s1 + $0x58] sm:$0xf]
        %v374 = vld [vmem:[%s1 + $0x5c] sm:$0xf]
        %v375 = vld [vmem:[%s1 + $0x60] sm:$0xf]
        %v376 = vld [vmem:[%s1 + $0x64] sm:$0xf]
        %v377 = vld [vmem:[%s1 + $0x68] sm:$0xf]
        %v378 = vld [vmem:[%s1 + $0x6c] sm:$0xf]
        %v379 = vld [vmem:[%s1 + $0x70] sm:$0xf]
        %v380 = vld [vmem:[%s1 + $0x74] sm:$0xf]
        %v381 = vld [vmem:[%s1 + $0x78] sm:$0xf]
        %v382 = vld [vmem:[%s1 + $0x7c] sm:$0xf]
        %v383 = vld [vmem:[%s1 + $0x80] sm:$0xf]
        %v384 = vld [vmem:[%s1 + $0x84] sm:$0xf]
        %v385 = vld [vmem:[%s1 + $0x88] sm:$0xf]
        %v386 = vld [vmem:[%s1 + $0x8c] sm:$0xf]
        %v387 = vld [vmem:[%s1 + $0x90] sm:$0xf]
        %v388 = vld [vmem:[%s1 + $0x94] sm:$0xf]
        %v389 = vld [vmem:[%s1 + $0x98] sm:$0xf]
        %v390 = vld [vmem:[%s1 + $0x9c] sm:$0xf]
        %v391 = vld [vmem:[%s1 + $0xa0] sm:$0xf]
        %v392 = vld [vmem:[%s1 + $0xa4] sm:$0xf]
        %v393 = vld [vmem:[%s1 + $0xa8] sm:$0xf]
        %v394 = vld [vmem:[%s1 + $0xac] sm:$0xf]
        %v395 = vld [vmem:[%s1 + $0xb0] sm:$0xf]
        %v396 = vld [vmem:[%s1 + $0xb4] sm:$0xf]
        %v397 = vld [vmem:[%s1 + $0xb8] sm:$0xf]
        %v398 = vld [vmem:[%s1 + $0xbc] sm:$0xf]
        %v399 = vld [vmem:[%s1 + $0xc0] sm:$0xf]
        %v400 = vld [vmem:[%s1 + $0xc4] sm:$0xf]
        %v401 = vld [vmem:[%s1 + $0xc8] sm:$0xf]
        %v402 = vld [vmem:[%s1 + $0xcc] sm:$0xf]
        %v403 = vld [vmem:[%s1 + $0xd0] sm:$0xf]
        %v404 = vld [vmem:[%s1 + $0xd4] sm:$0xf]
        %v405 = vld [vmem:[%s1 + $0xd8] sm:$0xf]
        %v406 = vld [vmem:[%s1 + $0xdc] sm:$0xf]
        %v407 = vld [vmem:[%s1 + $0xe0] sm:$0xf]
        %v408 = vld [vmem:[%s1 + $0xe4] sm:$0xf]
        %v409 = vld [vmem:[%s1 + $0xe8] sm:$0xf]
        %v410 = vld [vmem:[%s1 + $0xec] sm:$0xf]
        %v411 = vld [vmem:[%s1 + $0xf0] sm:$0xf]
        %v412 = vld [vmem:[%s1 + $0xf4] sm:$0xf]
        %v413 = vld [vmem:[%s1 + $0xf8] sm:$0xf]
        %v414 = vld [vmem:[%s1 + $0xfc] sm:$0xf]
        %v415 = vld [vmem:[%s1 + $0x100] sm:$0xf]
        %v416 = vld [vmem:[%s1 + $0x104] sm:$0xf]
        %v417 = vld [vmem:[%s1 + $0x108] sm:$0xf]
        %v418 = vld [vmem:[%s1 + $0x10c] sm:$0xf]
        %v419 = vld [vmem:[%s1 + $0x110] sm:$0xf]
        %v420 = vld [vmem:[%s1 + $0x114] sm:$0xf]
        %v421 = vld [vmem:[%s1 + $0x118] sm:$0xf]
        %v422 = vld [vmem:[%s1 + $0x11c] sm:$0xf]
        %v423 = vld [vmem:[%s1 + $0x120] sm:$0xf]
        %v424 = vld [vmem:[%s1 + $0x124] sm:$0xf]
        %v425 = vld [vmem:[%s1 + $0x128] sm:$0xf]
        %v426 = vld [vmem:[%s1 + $0x12c] sm:$0xf]
        %v427 = vld [vmem:[%s1 + $0x130] sm:$0xf]
        %v428 = vld [vmem:[%s1 + $0x134] sm:$0xf]
        %v429 = vld [vmem:[%s1 + $0x138] sm:$0xf]
        %v430 = vld [vmem:[%s1 + $0x13c] sm:$0xf]
        %v431 = vld [vmem:[%s1 + $0x140] sm:$0xf]
        %v432 = vld [vmem:[%s1 + $0x144] sm:$0xf]
        %v433 = vld [vmem:[%s1 + $0x148] sm:$0xf]
        %v434 = vld [vmem:[%s1 + $0x14c] sm:$0xf]
        %v435 = vld [vmem:[%s1 + $0x150] sm:$0xf]
        %v436 = vld [vmem:[%s1 + $0x154] sm:$0xf]
        %v437 = vld [vmem:[%s1 + $0x158] sm:$0xf]
        %v438 = vld [vmem:[%s1 + $0x15c] sm:$0xf]
        %v439 = vld [vmem:[%s1 + $0x160] sm:$0xf]
        %v440 = vld [vmem:[%s1 + $0x164] sm:$0xf]
        %v441 = vld [vmem:[%s1 + $0x168] sm:$0xf]
        %v442 = vld [vmem:[%s1 + $0x16c] sm:$0xf]
        %v443 = vld [vmem:[%s1 + $0x170] sm:$0xf]
        %v444 = vld [vmem:[%s1 + $0x174] sm:$0xf]
        %v445 = vld [vmem:[%s1 + $0x178] sm:$0xf]
        %v446 = vld [vmem:[%s1 + $0x17c] sm:$0xf]
        %v447 = vld [vmem:[%s1 + $0x180] sm:$0xf]
        %v448 = vld [vmem:[%s1 + $0x184] sm:$0xf]
        %v449 = vld [vmem:[%s2] sm:$0x1]
        %v451 = vlaneseq
        %v452 = vshrl.u32 %v451, 7
        %v453 = vsub.s32 0, %v452
        %v454 = vrot.slane %v449, %v453
        %v554 = vunpack.c.l.b16 %v351
        %v555 = vunpack.c.l.b16 %v352
        %v556 = vunpack.c.l.b16 %v353
        %v557 = vunpack.c.l.b16 %v354
        %v558 = vunpack.c.l.b16 %v355
        %v559 = vunpack.c.l.b16 %v356
        %v560 = vunpack.c.l.b16 %v357
        %v561 = vunpack.c.l.b16 %v358
        %v562 = vunpack.c.l.b16 %v359
        %v563 = vunpack.c.l.b16 %v360
        %v564 = vunpack.c.l.b16 %v361
        %v565 = vunpack.c.l.b16 %v362
        %v566 = vunpack.c.l.b16 %v363
        %v567 = vunpack.c.l.b16 %v364
        %v568 = vunpack.c.l.b16 %v365
        %v569 = vunpack.c.l.b16 %v366
        %v570 = vunpack.c.l.b16 %v367
        %v571 = vunpack.c.l.b16 %v368
        %v572 = vunpack.c.l.b16 %v369
        %v573 = vunpack.c.l.b16 %v370
        %v574 = vunpack.c.l.b16 %v371
        %v575 = vunpack.c.l.b16 %v372
        %v576 = vunpack.c.l.b16 %v373
        %v577 = vunpack.c.l.b16 %v374
        %v578 = vunpack.c.l.b16 %v375
        %v579 = vunpack.c.l.b16 %v376
        %v580 = vunpack.c.l.b16 %v377
        %v581 = vunpack.c.l.b16 %v378
        %v582 = vunpack.c.l.b16 %v379
        %v583 = vunpack.c.l.b16 %v380
        %v584 = vunpack.c.l.b16 %v381
        %v585 = vunpack.c.l.b16 %v382
        %v586 = vunpack.c.l.b16 %v383
        %v587 = vunpack.c.l.b16 %v384
        %v588 = vunpack.c.l.b16 %v385
        %v589 = vunpack.c.l.b16 %v386
        %v590 = vunpack.c.l.b16 %v387
        %v591 = vunpack.c.l.b16 %v388
        %v592 = vunpack.c.l.b16 %v389
        %v593 = vunpack.c.l.b16 %v390
        %v594 = vunpack.c.l.b16 %v391
        %v595 = vunpack.c.l.b16 %v392
        %v596 = vunpack.c.l.b16 %v393
        %v597 = vunpack.c.l.b16 %v394
        %v598 = vunpack.c.l.b16 %v395
        %v599 = vunpack.c.l.b16 %v396
        %v600 = vunpack.c.l.b16 %v397
        %v601 = vunpack.c.l.b16 %v398
        %v602 = vunpack.c.l.b16 %v399
        %v603 = vunpack.c.l.b16 %v400
        %v604 = vunpack.c.l.b16 %v401
        %v605 = vunpack.c.l.b16 %v402
        %v606 = vunpack.c.l.b16 %v403
        %v607 = vunpack.c.l.b16 %v404
        %v608 = vunpack.c.l.b16 %v405
        %v609 = vunpack.c.l.b16 %v406
        %v610 = vunpack.c.l.b16 %v407
        %v611 = vunpack.c.l.b16 %v408
        %v612 = vunpack.c.l.b16 %v409
        %v613 = vunpack.c.l.b16 %v410
        %v614 = vunpack.c.l.b16 %v411
        %v615 = vunpack.c.l.b16 %v412
        %v616 = vunpack.c.l.b16 %v413
        %v617 = vunpack.c.l.b16 %v414
        %v618 = vunpack.c.l.b16 %v415
        %v619 = vunpack.c.l.b16 %v416
        %v620 = vunpack.c.l.b16 %v417
        %v621 = vunpack.c.l.b16 %v418
        %v622 = vunpack.c.l.b16 %v419
        %v623 = vunpack.c.l.b16 %v420
        %v624 = vunpack.c.l.b16 %v421
        %v625 = vunpack.c.l.b16 %v422
        %v626 = vunpack.c.l.b16 %v423
        %v627 = vunpack.c.l.b16 %v424
        %v628 = vunpack.c.l.b16 %v425
        %v629 = vunpack.c.l.b16 %v426
        %v630 = vunpack.c.l.b16 %v427
        %v631 = vunpack.c.l.b16 %v428
        %v632 = vunpack.c.l.b16 %v429
        %v633 = vunpack.c.l.b16 %v430
        %v634 = vunpack.c.l.b16 %v431
        %v635 = vunpack.c.l.b16 %v432
        %v636 = vunpack.c.l.b16 %v433
        %v637 = vunpack.c.l.b16 %v434
        %v638 = vunpack.c.l.b16 %v435
        %v639 = vunpack.c.l.b16 %v436
        %v640 = vunpack.c.l.b16 %v437
        %v641 = vunpack.c.l.b16 %v438
        %v642 = vunpack.c.l.b16 %v439
        %v643 = vunpack.c.l.b16 %v440
        %v644 = vunpack.c.l.b16 %v441
        %v645 = vunpack.c.l.b16 %v442
        %v646 = vunpack.c.l.b16 %v443
        %v647 = vunpack.c.l.b16 %v444
        %v648 = vunpack.c.l.b16 %v445
        %v649 = vunpack.c.l.b16 %v446
        %v650 = vunpack.c.l.b16 %v447
        %v651 = vunpack.c.l.b16 %v448
        %v652 = vpack.c.b16 %v555, %v554
        %v653 = vpack.c.b16 %v557, %v556
        %v654 = vpack.c.b16 %v559, %v558
        %v655 = vpack.c.b16 %v561, %v560
        %v656 = vpack.c.b16 %v563, %v562
        %v657 = vpack.c.b16 %v565, %v564
        %v658 = vpack.c.b16 %v567, %v566
        %v659 = vpack.c.b16 %v569, %v568
        %v660 = vpack.c.b16 %v571, %v570
        %v661 = vpack.c.b16 %v573, %v572
        %v662 = vpack.c.b16 %v575, %v574
        %v663 = vpack.c.b16 %v577, %v576
        %v664 = vpack.c.b16 %v579, %v578
        %v665 = vpack.c.b16 %v581, %v580
        %v666 = vpack.c.b16 %v583, %v582
        %v667 = vpack.c.b16 %v585, %v584
        %v668 = vpack.c.b16 %v587, %v586
        %v669 = vpack.c.b16 %v589, %v588
        %v670 = vpack.c.b16 %v591, %v590
        %v671 = vpack.c.b16 %v593, %v592
        %v672 = vpack.c.b16 %v595, %v594
        %v673 = vpack.c.b16 %v597, %v596
        %v674 = vpack.c.b16 %v599, %v598
        %v675 = vpack.c.b16 %v601, %v600
        %v676 = vpack.c.b16 %v603, %v602
        %v677 = vpack.c.b16 %v605, %v604
        %v678 = vpack.c.b16 %v607, %v606
        %v679 = vpack.c.b16 %v609, %v608
        %v680 = vpack.c.b16 %v611, %v610
        %v681 = vpack.c.b16 %v613, %v612
        %v682 = vpack.c.b16 %v615, %v614
        %v683 = vpack.c.b16 %v617, %v616
        %v684 = vpack.c.b16 %v619, %v618
        %v685 = vpack.c.b16 %v621, %v620
        %v686 = vpack.c.b16 %v623, %v622
        %v687 = vpack.c.b16 %v625, %v624
        %v688 = vpack.c.b16 %v627, %v626
        %v689 = vpack.c.b16 %v629, %v628
        %v690 = vpack.c.b16 %v631, %v630
        %v691 = vpack.c.b16 %v633, %v632
        %v692 = vpack.c.b16 %v635, %v634
        %v693 = vpack.c.b16 %v637, %v636
        %v694 = vpack.c.b16 %v639, %v638
        %v695 = vpack.c.b16 %v641, %v640
        %v696 = vpack.c.b16 %v643, %v642
        %v697 = vpack.c.b16 %v645, %v644
        %v698 = vpack.c.b16 %v647, %v646
        %v699 = vpack.c.b16 %v649, %v648
        %v700 = vpack.c.b16 %v651, %v650
        %vm750 = vcmask 130048
        %v752 = vsel %vm750, %v343, 0
        %v755 = vsel %vm750, %v350, 0
        %757 = vmatprep.subr.bf16.mxu0 0
        %758 = vmatpush1.bf16.msra.mxu0 %v652
        %759 = vmatprep.subr.bf16.mxu0 0
        %760 = vmatpush1.bf16.msra.mxu0 %v653
        %761 = vmatprep.subr.bf16.mxu0 0
        %762 = vmatpush1.bf16.msra.mxu0 %v654
        %763 = vmatprep.subr.bf16.mxu0 0
        %764 = vmatpush1.bf16.msra.mxu0 %v655
        %765 = vmatprep.subr.bf16.mxu0 0
        %766 = vmatpush1.bf16.msra.mxu0 %v656
        %767 = vmatprep.subr.bf16.mxu0 0
        %768 = vmatpush1.bf16.msra.mxu0 %v657
        %769 = vmatprep.subr.bf16.mxu0 0
        %770 = vmatpush1.bf16.msra.mxu0 %v658
        %771 = vmatprep.subr.bf16.mxu0 0
        %772 = vmatpush1.bf16.msra.mxu0 %v659
        %773 = vmatprep.subr.bf16.mxu0 0
        %774 = vmatpush1.bf16.msra.mxu0 %v660
        %775 = vmatprep.subr.bf16.mxu0 0
        %776 = vmatpush1.bf16.msra.mxu0 %v661
        %777 = vmatprep.subr.bf16.mxu0 0
        %778 = vmatpush1.bf16.msra.mxu0 %v662
        %779 = vmatprep.subr.bf16.mxu0 0
        %780 = vmatpush1.bf16.msra.mxu0 %v663
        %781 = vmatprep.subr.bf16.mxu0 0
        %782 = vmatpush1.bf16.msra.mxu0 %v664
        %783 = vmatprep.subr.bf16.mxu0 0
        %784 = vmatpush1.bf16.msra.mxu0 %v665
        %785 = vmatprep.subr.bf16.mxu0 0
        %786 = vmatpush1.bf16.msra.mxu0 %v666
        %787 = vmatprep.subr.bf16.mxu0 0
        %788 = vmatpush1.bf16.msra.mxu0 %v667
        %789 = vmatprep.mubr.bf16.mxu0 %v338
        %790 = vmatmul.mubr.bf16.gmra.mrb[0].mxu0 %v337
        %v791 = vpop.f32.mrb[0].mxu0
        %v792 = vadd.f32 %v454, %v791
        %v793 = vpop.f32.mrb[0].mxu0
        %v794 = vpop.f32.mrb[0].mxu0
        %v795 = vadd.f32 %v454, %v794
        %v796 = vpop.f32.mrb[0].mxu0
        %797 = vmatprep.mubr.bf16.mxu0 %v345
        %798 = vmatmul.mubr.bf16.gmra.mrb[0].mxu0 %v344
        %v799 = vpop.f32.mrb[0].mxu0
        %v800 = vadd.f32 %v454, %v799
        %v801 = vpop.f32.mrb[0].mxu0
        %v802 = vpop.f32.mrb[0].mxu0
        %v803 = vadd.f32 %v454, %v802
        %v804 = vpop.f32.mrb[0].mxu0
        %805 = vdwg.mxu0
        %806 = vmatprep.subr.bf16.mxu0 0
        %807 = vmatpush1.bf16.msra.mxu0 %v668
        %808 = vmatprep.subr.bf16.mxu0 0
        %809 = vmatpush1.bf16.msra.mxu0 %v669
        %810 = vmatprep.subr.bf16.mxu0 0
        %811 = vmatpush1.bf16.msra.mxu0 %v670
        %812 = vmatprep.subr.bf16.mxu0 0
        %813 = vmatpush1.bf16.msra.mxu0 %v671
        %814 = vmatprep.subr.bf16.mxu0 0
        %815 = vmatpush1.bf16.msra.mxu0 %v672
        %816 = vmatprep.subr.bf16.mxu0 0
        %817 = vmatpush1.bf16.msra.mxu0 %v673
        %818 = vmatprep.subr.bf16.mxu0 0
        %819 = vmatpush1.bf16.msra.mxu0 %v674
        %820 = vmatprep.subr.bf16.mxu0 0
        %821 = vmatpush1.bf16.msra.mxu0 %v675
        %822 = vmatprep.subr.bf16.mxu0 0
        %823 = vmatpush1.bf16.msra.mxu0 %v676
        %824 = vmatprep.subr.bf16.mxu0 0
        %825 = vmatpush1.bf16.msra.mxu0 %v677
        %826 = vmatprep.subr.bf16.mxu0 0
        %827 = vmatpush1.bf16.msra.mxu0 %v678
        %828 = vmatprep.subr.bf16.mxu0 0
        %829 = vmatpush1.bf16.msra.mxu0 %v679
        %830 = vmatprep.subr.bf16.mxu0 0
        %831 = vmatpush1.bf16.msra.mxu0 %v680
        %832 = vmatprep.subr.bf16.mxu0 0
        %833 = vmatpush1.bf16.msra.mxu0 %v681
        %834 = vmatprep.subr.bf16.mxu0 0
        %835 = vmatpush1.bf16.msra.mxu0 %v682
        %836 = vmatprep.subr.bf16.mxu0 0
        %837 = vmatpush1.bf16.msra.mxu0 %v683
        %838 = vmatprep.mubr.bf16.mxu0 %v340
        %839 = vmatmul.mubr.bf16.gmra.mrb[0].mxu0 %v339
        %v840 = vpop.f32.mrb[0].mxu0
        %v841 = vadd.f32 %v792, %v840
        %v842 = vpop.f32.mrb[0].mxu0
        %v843 = vpop.f32.mrb[0].mxu0
        %v844 = vadd.f32 %v795, %v843
        %v845 = vpop.f32.mrb[0].mxu0
        %846 = vmatprep.mubr.bf16.mxu0 %v347
        %847 = vmatmul.mubr.bf16.gmra.mrb[0].mxu0 %v346
        %v848 = vpop.f32.mrb[0].mxu0
        %v849 = vadd.f32 %v800, %v848
        %v850 = vpop.f32.mrb[0].mxu0
        %v851 = vpop.f32.mrb[0].mxu0
        %v852 = vadd.f32 %v803, %v851
        %v853 = vpop.f32.mrb[0].mxu0
        %854 = vdwg.mxu0
        %855 = vmatprep.subr.bf16.mxu0 0
        %856 = vmatpush1.bf16.msra.mxu0 %v684
        %857 = vmatprep.subr.bf16.mxu0 0
        %858 = vmatpush1.bf16.msra.mxu0 %v685
        %859 = vmatprep.subr.bf16.mxu0 0
        %860 = vmatpush1.bf16.msra.mxu0 %v686
        %861 = vmatprep.subr.bf16.mxu0 0
        %862 = vmatpush1.bf16.msra.mxu0 %v687
        %863 = vmatprep.subr.bf16.mxu0 0
        %864 = vmatpush1.bf16.msra.mxu0 %v688
        %865 = vmatprep.subr.bf16.mxu0 0
        %866 = vmatpush1.bf16.msra.mxu0 %v689
        %867 = vmatprep.subr.bf16.mxu0 0
        %868 = vmatpush1.bf16.msra.mxu0 %v690
        %869 = vmatprep.subr.bf16.mxu0 0
        %870 = vmatpush1.bf16.msra.mxu0 %v691
        %871 = vmatprep.subr.bf16.mxu0 0
        %872 = vmatpush1.bf16.msra.mxu0 %v692
        %873 = vmatprep.subr.bf16.mxu0 0
        %874 = vmatpush1.bf16.msra.mxu0 %v693
        %875 = vmatprep.subr.bf16.mxu0 0
        %876 = vmatpush1.bf16.msra.mxu0 %v694
        %877 = vmatprep.subr.bf16.mxu0 0
        %878 = vmatpush1.bf16.msra.mxu0 %v695
        %879 = vmatprep.subr.bf16.mxu0 0
        %880 = vmatpush1.bf16.msra.mxu0 %v696
        %881 = vmatprep.subr.bf16.mxu0 0
        %882 = vmatpush1.bf16.msra.mxu0 %v697
        %883 = vmatprep.subr.bf16.mxu0 0
        %884 = vmatpush1.bf16.msra.mxu0 %v698
        %885 = vmatprep.subr.bf16.mxu0 0
        %886 = vmatpush1.bf16.msra.mxu0 %v699
        %887 = vmatprep.mubr.bf16.mxu0 %v342
        %888 = vmatmul.mubr.bf16.gmra.mrb[0].mxu0 %v341
        %v889 = vpop.f32.mrb[0].mxu0
        %v890 = vadd.f32 %v841, %v889
        %v891 = vpop.f32.mrb[0].mxu0
        %v892 = vpop.f32.mrb[0].mxu0
        %v893 = vadd.f32 %v844, %v892
        %v894 = vpop.f32.mrb[0].mxu0
        %895 = vmatprep.mubr.bf16.mxu0 %v349
        %896 = vmatmul.mubr.bf16.gmra.mrb[0].mxu0 %v348
        %v897 = vpop.f32.mrb[0].mxu0
        %v898 = vadd.f32 %v849, %v897
        %v899 = vpop.f32.mrb[0].mxu0
        %v900 = vpop.f32.mrb[0].mxu0
        %v901 = vadd.f32 %v852, %v900
        %v902 = vpop.f32.mrb[0].mxu0
        %903 = vdwg.mxu0
        %904 = vmatprep.subr.bf16.mxu0 0
        %905 = vmatpush1.bf16.msra.mxu0 %v700
        %906 = vmatprep.subr.bf16.mxu0 0
        %907 = vmatpush1.bf16.msra.mxu0 0
        %908 = vmatprep.subr.bf16.mxu0 0
        %909 = vmatpush1.bf16.msra.mxu0 0
        %910 = vmatprep.subr.bf16.mxu0 0
        %911 = vmatpush1.bf16.msra.mxu0 0
        %912 = vmatprep.subr.bf16.mxu0 0
        %913 = vmatpush1.bf16.msra.mxu0 0
        %914 = vmatprep.subr.bf16.mxu0 0
        %915 = vmatpush1.bf16.msra.mxu0 0
        %916 = vmatprep.subr.bf16.mxu0 0
        %917 = vmatpush1.bf16.msra.mxu0 0
        %918 = vmatprep.subr.bf16.mxu0 0
        %919 = vmatpush1.bf16.msra.mxu0 0
        %920 = vmatprep.subr.bf16.mxu0 0
        %921 = vmatpush1.bf16.msra.mxu0 0
        %922 = vmatprep.subr.bf16.mxu0 0
        %923 = vmatpush1.bf16.msra.mxu0 0
        %924 = vmatprep.subr.bf16.mxu0 0
        %925 = vmatpush1.bf16.msra.mxu0 0
        %926 = vmatprep.subr.bf16.mxu0 0
        %927 = vmatpush1.bf16.msra.mxu0 0
        %928 = vmatprep.subr.bf16.mxu0 0
        %929 = vmatpush1.bf16.msra.mxu0 0
        %930 = vmatprep.subr.bf16.mxu0 0
        %931 = vmatpush1.bf16.msra.mxu0 0
        %932 = vmatprep.subr.bf16.mxu0 0
        %933 = vmatpush1.bf16.msra.mxu0 0
        %934 = vmatprep.subr.bf16.mxu0 0
        %935 = vmatpush1.bf16.msra.mxu0 0
        %936 = vmatprep.mubr.bf16.mxu0 0
        %937 = vmatmul.mubr.bf16.gmra.mrb[0].mxu0 %v752
        %v938 = vpop.f32.mrb[0].mxu0
        %v939 = vadd.f32 %v890, %v938
        %v940 = vpop.f32.mrb[0].mxu0
        %v941 = vpop.f32.mrb[0].mxu0
        %v942 = vadd.f32 %v893, %v941
        %v943 = vpop.f32.mrb[0].mxu0
        %944 = vmatprep.mubr.bf16.mxu0 0
        %945 = vmatmul.mubr.bf16.gmra.mrb[0].mxu0 %v755
        %v946 = vpop.f32.mrb[0].mxu0
        %v947 = vadd.f32 %v898, %v946
        %v948 = vpop.f32.mrb[0].mxu0
        %v949 = vpop.f32.mrb[0].mxu0
        %v950 = vadd.f32 %v901, %v949
        %v951 = vpop.f32.mrb[0].mxu0
        %952 = vdwg.mxu0
        %v953 = vmax.f32 %v939, 0.0
        %v954 = vmax.f32 %v942, 0.0
        %v955 = vmax.f32 %v947, 0.0
        %v956 = vmax.f32 %v950, 0.0
        %v957 = vpack.c.bf16 %v954, %v953
        %v958 = vpack.c.bf16 %v956, %v955
        %v959 = vld [vmem:[%s3] sm:$0xf]
        %v960 = vld [vmem:[%s3 + $0x4] sm:$0xf]
        %v961 = vld [vmem:[%s3 + $0x8] sm:$0xf]
        %v962 = vld [vmem:[%s3 + $0xc] sm:$0xf]
        %v963 = vld [vmem:[%s3 + $0x10] sm:$0xf]
        %v964 = vld [vmem:[%s3 + $0x14] sm:$0xf]
        %v965 = vld [vmem:[%s3 + $0x18] sm:$0xf]
        %v966 = vld [vmem:[%s3 + $0x1c] sm:$0xf]
        %v967 = vld [vmem:[%s3 + $0x20] sm:$0xf]
        %v968 = vld [vmem:[%s3 + $0x24] sm:$0xf]
        %v969 = vld [vmem:[%s3 + $0x28] sm:$0xf]
        %v970 = vld [vmem:[%s3 + $0x2c] sm:$0xf]
        %v971 = vld [vmem:[%s3 + $0x30] sm:$0xf]
        %v972 = vld [vmem:[%s3 + $0x34] sm:$0xf]
        %v973 = vld [vmem:[%s3 + $0x38] sm:$0xf]
        %v974 = vld [vmem:[%s3 + $0x3c] sm:$0xf]
        %v975 = vld [vmem:[%s4] sm:$0x1]
        %v977 = vlaneseq
        %v978 = vshrl.u32 %v977, 7
        %v979 = vsub.s32 0, %v978
        %v980 = vrot.slane %v975, %v979
        %v998 = vunpack.c.l.b16 %v959
        %v999 = vunpack.c.l.b16 %v960
        %v1000 = vunpack.c.l.b16 %v961
        %v1001 = vunpack.c.l.b16 %v962
        %v1002 = vunpack.c.l.b16 %v963
        %v1003 = vunpack.c.l.b16 %v964
        %v1004 = vunpack.c.l.b16 %v965
        %v1005 = vunpack.c.l.b16 %v966
        %v1006 = vunpack.c.l.b16 %v967
        %v1007 = vunpack.c.l.b16 %v968
        %v1008 = vunpack.c.l.b16 %v969
        %v1009 = vunpack.c.l.b16 %v970
        %v1010 = vunpack.c.l.b16 %v971
        %v1011 = vunpack.c.l.b16 %v972
        %v1012 = vunpack.c.l.b16 %v973
        %v1013 = vunpack.c.l.b16 %v974
        %v1014 = vpack.c.b16 %v999, %v998
        %v1015 = vpack.c.b16 %v1001, %v1000
        %v1016 = vpack.c.b16 %v1003, %v1002
        %v1017 = vpack.c.b16 %v1005, %v1004
        %v1018 = vpack.c.b16 %v1007, %v1006
        %v1019 = vpack.c.b16 %v1009, %v1008
        %v1020 = vpack.c.b16 %v1011, %v1010
        %v1021 = vpack.c.b16 %v1013, %v1012
        %1030 = vmatprep.subr.bf16.mxu0 0
        %1031 = vmatpush1.bf16.msra.mxu0 %v1014
        %1032 = vmatprep.subr.bf16.mxu0 0
        %1033 = vmatpush1.bf16.msra.mxu0 %v1015
        %1034 = vmatprep.subr.bf16.mxu0 0
        %1035 = vmatpush1.bf16.msra.mxu0 %v1016
        %1036 = vmatprep.subr.bf16.mxu0 0
        %1037 = vmatpush1.bf16.msra.mxu0 %v1017
        %1038 = vmatprep.subr.bf16.mxu0 0
        %1039 = vmatpush1.bf16.msra.mxu0 %v1018
        %1040 = vmatprep.subr.bf16.mxu0 0
        %1041 = vmatpush1.bf16.msra.mxu0 %v1019
        %1042 = vmatprep.subr.bf16.mxu0 0
        %1043 = vmatpush1.bf16.msra.mxu0 %v1020
        %1044 = vmatprep.subr.bf16.mxu0 0
        %1045 = vmatpush1.bf16.msra.mxu0 %v1021
        %1046 = vmatprep.subr.bf16.mxu0 0
        %1047 = vmatpush1.bf16.msra.mxu0 0
        %1048 = vmatprep.subr.bf16.mxu0 0
        %1049 = vmatpush1.bf16.msra.mxu0 0
        %1050 = vmatprep.subr.bf16.mxu0 0
        %1051 = vmatpush1.bf16.msra.mxu0 0
        %1052 = vmatprep.subr.bf16.mxu0 0
        %1053 = vmatpush1.bf16.msra.mxu0 0
        %1054 = vmatprep.subr.bf16.mxu0 0
        %1055 = vmatpush1.bf16.msra.mxu0 0
        %1056 = vmatprep.subr.bf16.mxu0 0
        %1057 = vmatpush1.bf16.msra.mxu0 0
        %1058 = vmatprep.subr.bf16.mxu0 0
        %1059 = vmatpush1.bf16.msra.mxu0 0
        %1060 = vmatprep.subr.bf16.mxu0 0
        %1061 = vmatpush1.bf16.msra.mxu0 0
        %1062 = vmatprep.mubr.bf16.mxu0 0
        %1063 = vmatmul.mubr.bf16.gmra.mrb[0].mxu0 %v957
        %v1064 = vpop.f32.mrb[0].mxu0
        %v1065 = vadd.f32 %v980, %v1064
        %v1066 = vpop.f32.mrb[0].mxu0
        %v1067 = vpop.f32.mrb[0].mxu0
        %v1068 = vadd.f32 %v980, %v1067
        %v1069 = vpop.f32.mrb[0].mxu0
        %1070 = vmatprep.mubr.bf16.mxu0 0
        %1071 = vmatmul.mubr.bf16.gmra.mrb[0].mxu0 %v958
        %v1072 = vpop.f32.mrb[0].mxu0
        %v1073 = vadd.f32 %v980, %v1072
        %v1074 = vpop.f32.mrb[0].mxu0
        %v1075 = vpop.f32.mrb[0].mxu0
        %v1076 = vadd.f32 %v980, %v1075
        %v1077 = vpop.f32.mrb[0].mxu0
        %1078 = vdwg.mxu0
        %v1079 = vmax.f32 %v1065, 0.0
        %v1080 = vmax.f32 %v1068, 0.0
        %v1081 = vmax.f32 %v1073, 0.0
        %v1082 = vmax.f32 %v1076, 0.0
        %v1083 = vpack.c.bf16 %v1080, %v1079
        %v1084 = vpack.c.bf16 %v1082, %v1081
        %v1085 = vld [vmem:[%s5] sm:$0xf]
        %v1086 = vld [vmem:[%s5 + $0x4] sm:$0xf]
        %v1087 = vld [vmem:[%s5 + $0x8] sm:$0xf]
        %v1088 = vld [vmem:[%s5 + $0xc] sm:$0xf]
        %v1089 = vld [vmem:[%s5 + $0x10] sm:$0xf]
        %v1090 = vld [vmem:[%s5 + $0x14] sm:$0xf]
        %v1091 = vld [vmem:[%s5 + $0x18] sm:$0xf]
        %v1092 = vld [vmem:[%s5 + $0x1c] sm:$0xf]
        %v1093 = vld [vmem:[%s5 + $0x20] sm:$0xf]
        %v1094 = vld [vmem:[%s5 + $0x24] sm:$0xf]
        %v1095 = vld [vmem:[%s5 + $0x28] sm:$0xf]
        %v1096 = vld [vmem:[%s5 + $0x2c] sm:$0xf]
        %v1097 = vld [vmem:[%s5 + $0x30] sm:$0xf]
        %v1098 = vld [vmem:[%s5 + $0x34] sm:$0xf]
        %v1099 = vld [vmem:[%s5 + $0x38] sm:$0xf]
        %v1100 = vld [vmem:[%s5 + $0x3c] sm:$0xf]
        %v1101 = vld [vmem:[%s6] sm:$0x1]
        %v1103 = vlaneseq
        %v1104 = vshrl.u32 %v1103, 7
        %v1105 = vsub.s32 0, %v1104
        %v1106 = vrot.slane %v1101, %v1105
        %v1124 = vunpack.c.l.b16 %v1085
        %v1125 = vunpack.c.l.b16 %v1086
        %v1126 = vunpack.c.l.b16 %v1087
        %v1127 = vunpack.c.l.b16 %v1088
        %v1128 = vunpack.c.l.b16 %v1089
        %v1129 = vunpack.c.l.b16 %v1090
        %v1130 = vunpack.c.l.b16 %v1091
        %v1131 = vunpack.c.l.b16 %v1092
        %v1132 = vunpack.c.l.b16 %v1093
        %v1133 = vunpack.c.l.b16 %v1094
        %v1134 = vunpack.c.l.b16 %v1095
        %v1135 = vunpack.c.l.b16 %v1096
        %v1136 = vunpack.c.l.b16 %v1097
        %v1137 = vunpack.c.l.b16 %v1098
        %v1138 = vunpack.c.l.b16 %v1099
        %v1139 = vunpack.c.l.b16 %v1100
        %v1140 = vpack.c.b16 %v1125, %v1124
        %v1141 = vpack.c.b16 %v1127, %v1126
        %v1142 = vpack.c.b16 %v1129, %v1128
        %v1143 = vpack.c.b16 %v1131, %v1130
        %v1144 = vpack.c.b16 %v1133, %v1132
        %v1145 = vpack.c.b16 %v1135, %v1134
        %v1146 = vpack.c.b16 %v1137, %v1136
        %v1147 = vpack.c.b16 %v1139, %v1138
        %1156 = vmatprep.subr.bf16.mxu0 0
        %1157 = vmatpush1.bf16.msra.mxu0 %v1140
        %1158 = vmatprep.subr.bf16.mxu0 0
        %1159 = vmatpush1.bf16.msra.mxu0 %v1141
        %1160 = vmatprep.subr.bf16.mxu0 0
        %1161 = vmatpush1.bf16.msra.mxu0 %v1142
        %1162 = vmatprep.subr.bf16.mxu0 0
        %1163 = vmatpush1.bf16.msra.mxu0 %v1143
        %1164 = vmatprep.subr.bf16.mxu0 0
        %1165 = vmatpush1.bf16.msra.mxu0 %v1144
        %1166 = vmatprep.subr.bf16.mxu0 0
        %1167 = vmatpush1.bf16.msra.mxu0 %v1145
        %1168 = vmatprep.subr.bf16.mxu0 0
        %1169 = vmatpush1.bf16.msra.mxu0 %v1146
        %1170 = vmatprep.subr.bf16.mxu0 0
        %1171 = vmatpush1.bf16.msra.mxu0 %v1147
        %1172 = vmatprep.subr.bf16.mxu0 0
        %1173 = vmatpush1.bf16.msra.mxu0 0
        %1174 = vmatprep.subr.bf16.mxu0 0
        %1175 = vmatpush1.bf16.msra.mxu0 0
        %1176 = vmatprep.subr.bf16.mxu0 0
        %1177 = vmatpush1.bf16.msra.mxu0 0
        %1178 = vmatprep.subr.bf16.mxu0 0
        %1179 = vmatpush1.bf16.msra.mxu0 0
        %1180 = vmatprep.subr.bf16.mxu0 0
        %1181 = vmatpush1.bf16.msra.mxu0 0
        %1182 = vmatprep.subr.bf16.mxu0 0
        %1183 = vmatpush1.bf16.msra.mxu0 0
        %1184 = vmatprep.subr.bf16.mxu0 0
        %1185 = vmatpush1.bf16.msra.mxu0 0
        %1186 = vmatprep.subr.bf16.mxu0 0
        %1187 = vmatpush1.bf16.msra.mxu0 0
        %1188 = vmatprep.mubr.bf16.mxu0 0
        %1189 = vmatmul.mubr.bf16.gmra.mrb[0].mxu0 %v1083
        %v1190 = vpop.f32.mrb[0].mxu0
        %v1191 = vadd.f32 %v1106, %v1190
        %v1192 = vpop.f32.mrb[0].mxu0
        %v1193 = vpop.f32.mrb[0].mxu0
        %v1194 = vadd.f32 %v1106, %v1193
        %v1195 = vpop.f32.mrb[0].mxu0
        %1196 = vmatprep.mubr.bf16.mxu0 0
        %1197 = vmatmul.mubr.bf16.gmra.mrb[0].mxu0 %v1084
        %v1198 = vpop.f32.mrb[0].mxu0
        %v1199 = vadd.f32 %v1106, %v1198
        %v1200 = vpop.f32.mrb[0].mxu0
        %v1201 = vpop.f32.mrb[0].mxu0
        %v1202 = vadd.f32 %v1106, %v1201
        %v1203 = vpop.f32.mrb[0].mxu0
        %1204 = vdwg.mxu0
        %v1205 = vpack.c.bf16 %v1194, %v1191
        %v1206 = vpack.c.bf16 %v1202, %v1199
        %v1209 = vunpack.c.l.b16 %v1205
        %v1210 = vunpack.c.h.b16 %v1205
        %v1211 = vunpack.c.l.b16 %v1206
        %v1212 = vunpack.c.h.b16 %v1206
        %v1213 = vpack.c.b16 %v1209, %v1209
        %v1214 = vpack.c.b16 %v1210, %v1210
        %v1215 = vpack.c.b16 %v1211, %v1211
        %v1216 = vpack.c.b16 %v1212, %v1212
        %1221 = vst [vmem:[%s285] sm:$0xf] %v1213
        %1222 = vst [vmem:[%s285 + $0x4] sm:$0xf] %v1214
        %1223 = vst [vmem:[%s285 + $0x8] sm:$0xf] %v1215
        %1224 = vst [vmem:[%s285 + $0xc] sm:$0xf] %v1216
        %s1225 = sand.u32 %s178, 1
        %s1226 = sand.u32 %s178, 1
        %s1227 = smul.addr %s1226, 16
        %s1228 = scalar_lea.vmem [#allocation2], %s1227
        // Predicated region
        $region49: #{_feedforward_nn.1} parent=47 // pred_check
          %p1229 = pneg %p188
        $region50: #{_feedforward_nn.1} parent=47 // pred_check_branch
          %1231 = sbr.rel (%p1229) target = $region52
        $region51: #{_feedforward_nn.1} parent=47 // pred_region
          %s1232 = smul.u32 4, %s18
          %s1233 = ssub.s32 5, %s1232
          %p1234 = scmp.lt.s32.totalorder %s1233, 4
          %s1235 = scalar_select %p1234, %s1233, 4
          %s1236 = smul.u32 64, %s1235
          %p1237 = scmp.ne.s32.totalorder 0, %s1236
          %s1238 = smul.addr %s1232, 4
          %s1239 = scalar_lea.vmem %s7, %s1238
          // Predicated region
          $region53: #{_feedforward_nn.1} parent=51 // pred_check
            %p1240 = pneg %p1237
          $region54: #{_feedforward_nn.1} parent=51 // pred_check_branch
            %1242 = sbr.rel (%p1240) target = $region56
          $region55: #{_feedforward_nn.1} parent=51 // pred_region
            // Predicated region
            $region57: #{_feedforward_nn.1} parent=55 // pred_check
              _
            $region58: #{_feedforward_nn.1} parent=55 // pred_check_branch
              %1244 = sbr.rel target = $region60
            $region59: #{_feedforward_nn.1} parent=55 // pred_region
              // Predicated region
              $region79: #{_feedforward_nn.1} parent=59 // pred_check
                _
              $region80: #{_feedforward_nn.1} parent=59 // pred_check_branch
                %1299 = sbr.rel (0) target = $region82
              $region81: #{_feedforward_nn.1} parent=59 // pred_region
                %s1301 = sshrl.u32 %s1235, 2
                // While loop
                $region83: #{_feedforward_nn.1} parent=81 // loop_pre_header
                  _
                $region84: #{_feedforward_nn.1} parent=81 // loop_header
                  %s1303 = sphi 0, %s1305
                  %p1304 = scmp.ge.s32.totalorder %s1303, %s1301
                  %s1308 = sphi 0, %s1321
                  %s1309 = sphi %s1228, %s1324
                  %s1310 = sphi %s1239, %s1325
                $region85: #{_feedforward_nn.1} parent=81 // loop_header_branch
                  %1307 = sbr.rel (%p1304) target = $region89
                $region86: #{_feedforward_nn.1} parent=81 // loop_body
                  %v1311 = vld [vmem:[%s1309] sm:$0xf]
                  %1312 = vst [vmem:[%s1310] sm:$0xf] %v1311
                  %v1313 = vld [vmem:[%s1309 + $0x4] sm:$0xf]
                  %1314 = vst [vmem:[%s1310 + $0x4] sm:$0xf] %v1313
                  %v1315 = vld [vmem:[%s1309 + $0x8] sm:$0xf]
                  %1316 = vst [vmem:[%s1310 + $0x8] sm:$0xf] %v1315
                  %v1317 = vld [vmem:[%s1309 + $0xc] sm:$0xf]
                  %1318 = vst [vmem:[%s1310 + $0xc] sm:$0xf] %v1317
                  %s1319 = sadd.s32 1, %s1308
                  %p1320 = scmp.ge.s32.totalorder %s1319, %s1301
                  %s1321 = scalar_select %p1320, 0, %s1319
                  %s1322 = smul.u32 %s1321, 16
                  %s1323 = smul.u32 %s1321, 16
                  %s1324 = scalar_lea.vmem %s1228, %s1322 [#allocation2]
                  %s1325 = scalar_lea.vmem %s1239, %s1323
                $region87: #{_feedforward_nn.1} parent=81 // loop_footer
                  %s1305 = sadd.s32 %s1303, 1
                $region88: #{_feedforward_nn.1} parent=81 // loop_footer_branch
                  %1302 = sbr.rel target = $region84
                $region89: #{_feedforward_nn.1} parent=81 // loop_exit
                  _
                %s1326 = sshrl.u32 %s1235, 2
                %s1327 = sand.u32 %s1235, 3
                %s1328 = smul.u32 %s1326, 4
                %s1329 = smul.u32 4, %s1328
                %s1330 = scalar_lea.vmem %s1228, %s1329 [#allocation2]
                %s1331 = smul.u32 4, %s1328
                %s1332 = scalar_lea.vmem %s1239, %s1331
                // While loop
                $region90: #{_feedforward_nn.1} parent=81 // loop_pre_header
                  _
                $region91: #{_feedforward_nn.1} parent=81 // loop_header
                  %s1334 = sphi 0, %s1336
                  %p1335 = scmp.ge.s32.totalorder %s1334, %s1327
                  %s1339 = sphi 0, %s1346
                  %s1340 = sphi %s1330, %s1349
                  %s1341 = sphi %s1332, %s1350
                $region92: #{_feedforward_nn.1} parent=81 // loop_header_branch
                  %1338 = sbr.rel (%p1335) target = $region96
                $region93: #{_feedforward_nn.1} parent=81 // loop_body
                  %v1342 = vld [vmem:[%s1340] sm:$0xf]
                  %1343 = vst [vmem:[%s1341] sm:$0xf] %v1342
                  %s1344 = sadd.s32 1, %s1339
                  %p1345 = scmp.ge.s32.totalorder %s1344, %s1327
                  %s1346 = scalar_select %p1345, 0, %s1344
                  %s1347 = smul.u32 %s1346, 4
                  %s1348 = smul.u32 %s1346, 4
                  %s1349 = scalar_lea.vmem %s1330, %s1347 [#allocation2]
                  %s1350 = scalar_lea.vmem %s1332, %s1348
                $region94: #{_feedforward_nn.1} parent=81 // loop_footer
                  %s1336 = sadd.s32 %s1334, 1
                $region95: #{_feedforward_nn.1} parent=81 // loop_footer_branch
                  %1333 = sbr.rel target = $region91
                $region96: #{_feedforward_nn.1} parent=81 // loop_exit
                  _
              $region82: #{_feedforward_nn.1} parent=59 // pred_fallthru
                _
            $region60: #{_feedforward_nn.1} parent=55 // pred_fallthru
              _
            // Predicated region
            $region61: #{_feedforward_nn.1} parent=55 // pred_check
              _
            $region62: #{_feedforward_nn.1} parent=55 // pred_check_branch
              %1246 = sbr.rel (0) target = $region64
            $region63: #{_feedforward_nn.1} parent=55 // pred_region
              %s1248 = sshrl.u32 %s1235, 2
              // While loop
              $region65: #{_feedforward_nn.1} parent=63 // loop_pre_header
                _
              $region66: #{_feedforward_nn.1} parent=63 // loop_header
                %s1250 = sphi 0, %s1252
                %p1251 = scmp.ge.s32.totalorder %s1250, %s1248
                %s1255 = sphi 0, %s1268
                %s1256 = sphi %s1228, %s1271
                %s1257 = sphi %s1239, %s1272
              $region67: #{_feedforward_nn.1} parent=63 // loop_header_branch
                %1254 = sbr.rel (%p1251) target = $region71
              $region68: #{_feedforward_nn.1} parent=63 // loop_body
                %v1258 = vld [vmem:[%s1256] sm:$0xf]
                %1259 = vst [vmem:[%s1257] sm:$0xf] %v1258
                %v1260 = vld [vmem:[%s1256 + $0x4] sm:$0xf]
                %1261 = vst [vmem:[%s1257 + $0x4] sm:$0xf] %v1260
                %v1262 = vld [vmem:[%s1256 + $0x8] sm:$0xf]
                %1263 = vst [vmem:[%s1257 + $0x8] sm:$0xf] %v1262
                %v1264 = vld [vmem:[%s1256 + $0xc] sm:$0xf]
                %1265 = vst [vmem:[%s1257 + $0xc] sm:$0xf] %v1264
                %s1266 = sadd.s32 1, %s1255
                %p1267 = scmp.ge.s32.totalorder %s1266, %s1248
                %s1268 = scalar_select %p1267, 0, %s1266
                %s1269 = smul.u32 %s1268, 16
                %s1270 = smul.u32 %s1268, 16
                %s1271 = scalar_lea.vmem %s1228, %s1269 [#allocation2]
                %s1272 = scalar_lea.vmem %s1239, %s1270
              $region69: #{_feedforward_nn.1} parent=63 // loop_footer
                %s1252 = sadd.s32 %s1250, 1
              $region70: #{_feedforward_nn.1} parent=63 // loop_footer_branch
                %1249 = sbr.rel target = $region66
              $region71: #{_feedforward_nn.1} parent=63 // loop_exit
                _
              %s1273 = sshrl.u32 %s1235, 2
              %s1274 = sand.u32 %s1235, 3
              %s1275 = smul.u32 %s1273, 4
              %s1276 = smul.u32 4, %s1275
              %s1277 = scalar_lea.vmem %s1228, %s1276 [#allocation2]
              %s1278 = smul.u32 4, %s1275
              %s1279 = scalar_lea.vmem %s1239, %s1278
              // While loop
              $region72: #{_feedforward_nn.1} parent=63 // loop_pre_header
                _
              $region73: #{_feedforward_nn.1} parent=63 // loop_header
                %s1281 = sphi 0, %s1283
                %p1282 = scmp.ge.s32.totalorder %s1281, %s1274
                %s1286 = sphi 0, %s1293
                %s1287 = sphi %s1277, %s1296
                %s1288 = sphi %s1279, %s1297
              $region74: #{_feedforward_nn.1} parent=63 // loop_header_branch
                %1285 = sbr.rel (%p1282) target = $region78
              $region75: #{_feedforward_nn.1} parent=63 // loop_body
                %v1289 = vld [vmem:[%s1287] sm:$0xf]
                %1290 = vst [vmem:[%s1288] sm:$0xf] %v1289
                %s1291 = sadd.s32 1, %s1286
                %p1292 = scmp.ge.s32.totalorder %s1291, %s1274
                %s1293 = scalar_select %p1292, 0, %s1291
                %s1294 = smul.u32 %s1293, 4
                %s1295 = smul.u32 %s1293, 4
                %s1296 = scalar_lea.vmem %s1277, %s1294 [#allocation2]
                %s1297 = scalar_lea.vmem %s1279, %s1295
              $region76: #{_feedforward_nn.1} parent=63 // loop_footer
                %s1283 = sadd.s32 %s1281, 1
              $region77: #{_feedforward_nn.1} parent=63 // loop_footer_branch
                %1280 = sbr.rel target = $region73
              $region78: #{_feedforward_nn.1} parent=63 // loop_exit
                _
            $region64: #{_feedforward_nn.1} parent=55 // pred_fallthru
              _
          $region56: #{_feedforward_nn.1} parent=51 // pred_fallthru
            _
          %1351 = vnop
        $region52: #{_feedforward_nn.1} parent=47 // pred_fallthru
          _
      $region48: #{_feedforward_nn.1} parent=5 // pred_fallthru
        _
      %p1352 = scmp.le.s32.totalorder 2, %s13
      // Predicated region
      $region97: #{_feedforward_nn.1} parent=5 // pred_check
        %p1353 = pneg %p1352
      $region98: #{_feedforward_nn.1} parent=5 // pred_check_branch
        %1355 = sbr.rel (%p1353) target = $region100
      $region99: #{_feedforward_nn.1} parent=5 // pred_region
        %s1356 = ssub.s32 %s13, 2
        // Predicated region
        $region101: #{_feedforward_nn.1} parent=99 // pred_check
          %p1357 = pneg %p194
        $region102: #{_feedforward_nn.1} parent=99 // pred_check_branch
          %1359 = sbr.rel (%p1357) target = $region104
        $region103: #{_feedforward_nn.1} parent=99 // pred_region
          %s1360 = sand.u32 %s179, 1
          %s1361 = sand.u32 %s179, 1
          %s1362 = smul.addr %s1361, 16
          %s1363 = scalar_lea.vmem [#allocation2], %s1362
        $region104: #{_feedforward_nn.1} parent=99 // pred_fallthru
          _
      $region100: #{_feedforward_nn.1} parent=5 // pred_fallthru
        _
    $region6: #{_feedforward_nn.1} parent=1 // loop_footer
      %s17 = sadd.s32 1, %s13
    $region7: #{_feedforward_nn.1} parent=1 // loop_footer_branch
      %12 = sbr.rel target = $region3
    $region8: #{_feedforward_nn.1} parent=1 // loop_exit
      _

</llo_original>
